<compile_context>
chip_gen: v7x
topology: tpu7x:2x2x1
jax: 0.10.0
libtpu: 0.0.40
codegen_flags: <defaults>
</compile_context>

<pallas_src>
import functools
import math

import jax
import jax.numpy as jnp
from jax.experimental import pallas as pl
from jax.experimental.pallas import tpu as pltpu


def _round_up(x, m):
    return (x + m - 1) // m * m


def ffnn_kernel(x_ref, w1_ref, b1_ref, w2_ref, b2_ref, w3_ref, b3_ref, o_ref,
                *, compute_dtype):
    """One bm-row tile of the fused 3-layer MLP.  Weights are stored (in, out) so the
    kernel computes x @ W + b (identical to torch's x @ W.T + b).  Matmuls run on the
    MXU with f32 accumulation; bias-add / ReLU stay f32 on the VPU."""
    f32 = jnp.float32
    x = x_ref[...].astype(compute_dtype)

    h = jnp.dot(x, w1_ref[...], preferred_element_type=f32) + b1_ref[...].astype(f32)
    h = jnp.maximum(h, 0.0)

    h = jnp.dot(h.astype(compute_dtype), w2_ref[...], preferred_element_type=f32) \
        + b2_ref[...].astype(f32)
    h = jnp.maximum(h, 0.0)

    h = jnp.dot(h.astype(compute_dtype), w3_ref[...], preferred_element_type=f32) \
        + b3_ref[...].astype(f32)
    h = jnp.maximum(h, 0.0)  # final ReLU: matches torch.relu(self.lin3(x))

    o_ref[...] = h.astype(o_ref.dtype)


def baseline_ffnn_forward(x, padded_params, *, block_m=512):
    """x: (batch, seq_size, embed_dim) f32.  padded_params: output of
    pad_and_cast_params.  Returns {'output': (batch, nc)} in f32.

    block_m: row tile.  512 reaches ~85% of the measured HBM roofline on v6e; on v7x
    1024-2048 is reasonable (keep batch > block_m so the grid has >= 2 steps and both
    TensorCores get work)."""
    batch = x.shape[0]
    x2d = x.reshape(batch, x.shape[1] * x.shape[2])  # same flatten as torch.reshape

    w1, b1, w2, b2, w3, b3 = padded_params
    in1, hid_p = w1.shape
    nc = w3.shape[1]
    assert x2d.shape[1] == in1, "flattened feature dim must match W1 rows"

    # Row tile: never larger than the sublane-rounded batch, so blocks never exceed
    # the array extent; ragged last tiles are masked by Pallas automatically.
    bm = min(block_m, _round_up(batch, 8))

    # Only pad the batch when it isn't a multiple of 8 sublanes (tiny copy).  The
    # feature dim is never padded: the x block's last dim equals the full array dim.
    batch_p = _round_up(batch, 8)
    if batch_p != batch:
        x2d = jnp.pad(x2d, ((0, batch_p - batch), (0, 0)))

    grid = (pl.cdiv(batch_p, bm),)

    flops = 2 * batch_p * (in1 * hid_p + hid_p * hid_p + hid_p * nc)
    bytes_accessed = int(
        x2d.size * x2d.dtype.itemsize
        + sum(int(p.size) * p.dtype.itemsize for p in padded_params)
        + batch_p * nc * 4
    )

    kernel = functools.partial(ffnn_kernel, compute_dtype=w1.dtype)

    out = pl.pallas_call(
        kernel,
        out_shape=jax.ShapeDtypeStruct((batch_p, nc), jnp.float32),
        grid_spec=pltpu.PrefetchScalarGridSpec(
            num_scalar_prefetch=0,
            grid=grid,
            in_specs=[
                # x tile streams over the batch grid axis (software-pipelined DMA).
                pl.BlockSpec((bm, in1), lambda i: (i, 0)),
                # Weights/biases: constant block index -> DMA'd once, VMEM-resident.
                pl.BlockSpec((in1, hid_p), lambda i: (0, 0)),
                pl.BlockSpec((1, hid_p), lambda i: (0, 0)),
                pl.BlockSpec((hid_p, hid_p), lambda i: (0, 0)),
                pl.BlockSpec((1, hid_p), lambda i: (0, 0)),
                pl.BlockSpec((hid_p, nc), lambda i: (0, 0)),
                pl.BlockSpec((1, nc), lambda i: (0, 0)),
            ],
            # Unpadded nc columns: 4x fewer output HBM bytes than padding nc to 128.
            out_specs=pl.BlockSpec((bm, nc), lambda i: (i, 0)),
        ),
        compiler_params=pltpu.CompilerParams(
            dimension_semantics=("parallel",),  # shard batch tiles across v7x's 2 TCs
        ),
        cost_estimate=pl.CostEstimate(
            flops=flops, transcendentals=0, bytes_accessed=bytes_accessed),
    )(x2d, w1, b1, w2, b2, w3, b3)

    if batch_p != batch:
        out = out[:batch]
    return {"output": out}


def init_params(key, embed_dim, seq_size):
    """nn.Linear-style init (uniform +-1/sqrt(fan_in)); weights stored (in, out)."""
    nc = embed_dim
    hidden = int(nc * 2)
    in1 = nc * seq_size
    dims = [(in1, hidden), (hidden, hidden), (hidden, nc)]
    params = []
    for fan_in, fan_out in dims:
        key, kw, kb = jax.random.split(key, 3)
        bound = 1.0 / math.sqrt(fan_in)
        w = jax.random.uniform(kw, (fan_in, fan_out), jnp.float32, -bound, bound)
        b = jax.random.uniform(kb, (1, fan_out), jnp.float32, -bound, bound)
        params.extend([w, b])
    return params


def pad_and_cast_params(params, *, lane=128, weights_dtype=jnp.bfloat16):
    """Zero-pad only the HIDDEN feature dim up to a 128-lane multiple (intermediates
    are VMEM-only, so this padding costs no HBM traffic and keeps them lane-dense);
    the input dim (W1 rows) and the output class dim (W3 cols / b3) stay unpadded so
    x and the output are not inflated in HBM.  Zero padding keeps the math exact.
    weights_dtype=bf16 is the native MXU path on v6e/v7x; pass jnp.float32 for exact
    f32 parity (recommended default on v5e)."""
    w1, b1, w2, b2, w3, b3 = params
    hid = w1.shape[1]
    hid_p = _round_up(hid, lane)

    def pad_cols(a, cols):
        return jnp.pad(a, ((0, 0), (0, cols - a.shape[1])))

    def pad_rows(a, rows):
        return jnp.pad(a, ((0, rows - a.shape[0]), (0, 0)))

    return [
        pad_cols(w1, hid_p).astype(weights_dtype),
        pad_cols(b1, hid_p).astype(weights_dtype),
        pad_cols(pad_rows(w2, hid_p), hid_p).astype(weights_dtype),
        pad_cols(b2, hid_p).astype(weights_dtype),
        pad_rows(w3, hid_p).astype(weights_dtype),
        b3.astype(weights_dtype),
    ]


def reference_forward(x, params):
    batch = x.shape[0]
    h = x.reshape(batch, -1)
    w1, b1, w2, b2, w3, b3 = params
    h = jnp.maximum(h @ w1 + b1, 0.0)
    h = jnp.maximum(h @ w2 + b2, 0.0)
    h = jnp.maximum(h @ w3 + b3, 0.0)
    return h


if __name__ == "__main__":
    embed_dim = 32   # nc
    seq_size = 8

    key = jax.random.PRNGKey(0)
    key, kp = jax.random.split(key)
    params = init_params(kp, embed_dim, seq_size)

    p_f32 = pad_and_cast_params(params, weights_dtype=jnp.float32)
    p_bf16 = pad_and_cast_params(params, weights_dtype=jnp.bfloat16)  # default path

    # batch=2   -> tiny pad-to-8, single grid step (latency-bound regime).
    # batch=600 -> bm=512, 2 grid steps ("parallel" -> both TCs on v7x) with a ragged
    #              last tile exercising Pallas boundary masking (no wrapper jnp.pad).
    for batch in (2, 600):
        key, kx = jax.random.split(key)
        x = jax.random.normal(kx, (batch, seq_size, embed_dim), jnp.float32)
        ref = reference_forward(x, params)

        out = baseline_ffnn_forward(x, p_f32)["output"]
        out = jax.block_until_ready(out)
        assert out.shape == (batch, embed_dim)
        assert jnp.allclose(out, ref, atol=1e-4, rtol=1e-4), \
            f"f32 mismatch vs reference at batch={batch}"

        out_bf16 = baseline_ffnn_forward(x, p_bf16)["output"]
        out_bf16 = jax.block_until_ready(out_bf16)
        assert out_bf16.shape == (batch, embed_dim)
        assert jnp.allclose(out_bf16, ref, atol=5e-2, rtol=5e-2), \
            f"bf16 mismatch vs reference at batch={batch}"

    print("KERNEL_OK")
</pallas_src>

<mosaic_0001>
module attributes {stable_mosaic.version = 11 : i64} {
  func.func @ffnn_kernel(%arg0: i32, %arg1: memref<8x256xf32, #tpu.memory_space<vmem>>, %arg2: memref<256x128xf32, #tpu.memory_space<vmem>>, %arg3: memref<1x128xf32, #tpu.memory_space<vmem>>, %arg4: memref<128x128xf32, #tpu.memory_space<vmem>>, %arg5: memref<1x128xf32, #tpu.memory_space<vmem>>, %arg6: memref<128x32xf32, #tpu.memory_space<vmem>>, %arg7: memref<1x32xf32, #tpu.memory_space<vmem>>, %arg8: memref<8x32xf32, #tpu.memory_space<vmem>>) attributes {dimension_semantics = [#tpu.dimension_semantics<parallel>], iteration_bounds = array<i64: 1>, scalar_prefetch = 0 : i64, scratch_operands = 0 : i64, tpu.core_type = #tpu.core_type<tc>, window_params = [{transform_indices = @transform_0, window_bounds = array<i64: 8, 256>}, {pipeline_mode = #tpu.pipeline_mode<synchronous>, transform_indices = @transform_1, window_bounds = array<i64: 256, 128>}, {pipeline_mode = #tpu.pipeline_mode<synchronous>, transform_indices = @transform_2, window_bounds = array<i64: 1, 128>}, {pipeline_mode = #tpu.pipeline_mode<synchronous>, transform_indices = @transform_3, window_bounds = array<i64: 128, 128>}, {pipeline_mode = #tpu.pipeline_mode<synchronous>, transform_indices = @transform_4, window_bounds = array<i64: 1, 128>}, {pipeline_mode = #tpu.pipeline_mode<synchronous>, transform_indices = @transform_5, window_bounds = array<i64: 128, 32>}, {pipeline_mode = #tpu.pipeline_mode<synchronous>, transform_indices = @transform_6, window_bounds = array<i64: 1, 32>}, {transform_indices = @transform_7, window_bounds = array<i64: 8, 32>}]} {
    %c0 = arith.constant 0 : index
    %c0_0 = arith.constant 0 : index
    %0 = vector.load %arg1[%c0, %c0_0] : memref<8x256xf32, #tpu.memory_space<vmem>>, vector<8x256xf32>
    %c0_1 = arith.constant 0 : index
    %c0_2 = arith.constant 0 : index
    %1 = vector.load %arg2[%c0_1, %c0_2] : memref<256x128xf32, #tpu.memory_space<vmem>>, vector<256x128xf32>
    %cst = arith.constant dense<0.000000e+00> : vector<8x128xf32>
    %2 = tpu.matmul %0, %1, %cst {dimension_numbers = #tpu.dot_dimension_numbers<[1], [0], [0], [1], [0, 0, 1, 1], [], []>} : vector<8x256xf32>, vector<256x128xf32>, vector<8x128xf32> -> vector<8x128xf32>
    %c0_3 = arith.constant 0 : index
    %c0_4 = arith.constant 0 : index
    %3 = vector.load %arg3[%c0_3, %c0_4] : memref<1x128xf32, #tpu.memory_space<vmem>>, vector<1x128xf32>
    %4 = vector.broadcast %3 : vector<1x128xf32> to vector<8x128xf32>
    %5 = arith.addf %2, %4 : vector<8x128xf32>
    %cst_5 = arith.constant 0.000000e+00 : f32
    %6 = vector.broadcast %cst_5 : f32 to vector<8x128xf32>
    %7 = arith.maximumf %5, %6 : vector<8x128xf32>
    %c0_6 = arith.constant 0 : index
    %c0_7 = arith.constant 0 : index
    %8 = vector.load %arg4[%c0_6, %c0_7] : memref<128x128xf32, #tpu.memory_space<vmem>>, vector<128x128xf32>
    %cst_8 = arith.constant dense<0.000000e+00> : vector<8x128xf32>
    %9 = tpu.matmul %7, %8, %cst_8 {dimension_numbers = #tpu.dot_dimension_numbers<[1], [0], [0], [1], [0, 0, 1, 1], [], []>} : vector<8x128xf32>, vector<128x128xf32>, vector<8x128xf32> -> vector<8x128xf32>
    %c0_9 = arith.constant 0 : index
    %c0_10 = arith.constant 0 : index
    %10 = vector.load %arg5[%c0_9, %c0_10] : memref<1x128xf32, #tpu.memory_space<vmem>>, vector<1x128xf32>
    %11 = vector.broadcast %10 : vector<1x128xf32> to vector<8x128xf32>
    %12 = arith.addf %9, %11 : vector<8x128xf32>
    %cst_11 = arith.constant 0.000000e+00 : f32
    %13 = vector.broadcast %cst_11 : f32 to vector<8x128xf32>
    %14 = arith.maximumf %12, %13 : vector<8x128xf32>
    %c0_12 = arith.constant 0 : index
    %c0_13 = arith.constant 0 : index
    %15 = vector.load %arg6[%c0_12, %c0_13] : memref<128x32xf32, #tpu.memory_space<vmem>>, vector<128x32xf32>
    %cst_14 = arith.constant dense<0.000000e+00> : vector<8x32xf32>
    %16 = tpu.matmul %14, %15, %cst_14 {dimension_numbers = #tpu.dot_dimension_numbers<[1], [0], [0], [1], [0, 0, 1, 1], [], []>} : vector<8x128xf32>, vector<128x32xf32>, vector<8x32xf32> -> vector<8x32xf32>
    %c0_15 = arith.constant 0 : index
    %c0_16 = arith.constant 0 : index
    %17 = vector.load %arg7[%c0_15, %c0_16] : memref<1x32xf32, #tpu.memory_space<vmem>>, vector<1x32xf32>
    %18 = vector.broadcast %17 : vector<1x32xf32> to vector<8x32xf32>
    %19 = arith.addf %16, %18 : vector<8x32xf32>
    %cst_17 = arith.constant 0.000000e+00 : f32
    %20 = vector.broadcast %cst_17 : f32 to vector<8x32xf32>
    %21 = arith.maximumf %19, %20 : vector<8x32xf32>
    %c0_18 = arith.constant 0 : index
    %c0_19 = arith.constant 0 : index
    %22 = vector.load %arg8[%c0_18, %c0_19] : memref<8x32xf32, #tpu.memory_space<vmem>>, vector<8x32xf32>
    tpu.vector_store %arg8[%c0_18, %c0_19], %21 {strides = array<i32>} : memref<8x32xf32, #tpu.memory_space<vmem>>, vector<8x32xf32>,
    return
  }
  func.func @transform_0(%arg0: i32) -> (i32, i32) {
    %c0_i32 = arith.constant 0 : i32
    %c0_i32_0 = arith.constant 0 : i32
    return %arg0, %c0_i32 : i32, i32
  }
  func.func @transform_1(%arg0: i32) -> (i32, i32) {
    %c0_i32 = arith.constant 0 : i32
    %c0_i32_0 = arith.constant 0 : i32
    %c0_i32_1 = arith.constant 0 : i32
    return %c0_i32, %c0_i32_0 : i32, i32
  }
  func.func @transform_2(%arg0: i32) -> (i32, i32) {
    %c0_i32 = arith.constant 0 : i32
    %c0_i32_0 = arith.constant 0 : i32
    %c0_i32_1 = arith.constant 0 : i32
    return %c0_i32, %c0_i32_0 : i32, i32
  }
  func.func @transform_3(%arg0: i32) -> (i32, i32) {
    %c0_i32 = arith.constant 0 : i32
    %c0_i32_0 = arith.constant 0 : i32
    %c0_i32_1 = arith.constant 0 : i32
    return %c0_i32, %c0_i32_0 : i32, i32
  }
  func.func @transform_4(%arg0: i32) -> (i32, i32) {
    %c0_i32 = arith.constant 0 : i32
    %c0_i32_0 = arith.constant 0 : i32
    %c0_i32_1 = arith.constant 0 : i32
    return %c0_i32, %c0_i32_0 : i32, i32
  }
  func.func @transform_5(%arg0: i32) -> (i32, i32) {
    %c0_i32 = arith.constant 0 : i32
    %c0_i32_0 = arith.constant 0 : i32
    %c0_i32_1 = arith.constant 0 : i32
    return %c0_i32, %c0_i32_0 : i32, i32
  }
  func.func @transform_6(%arg0: i32) -> (i32, i32) {
    %c0_i32 = arith.constant 0 : i32
    %c0_i32_0 = arith.constant 0 : i32
    %c0_i32_1 = arith.constant 0 : i32
    return %c0_i32, %c0_i32_0 : i32, i32
  }
  func.func @transform_7(%arg0: i32) -> (i32, i32) {
    %c0_i32 = arith.constant 0 : i32
    %c0_i32_0 = arith.constant 0 : i32
    return %arg0, %c0_i32 : i32, i32
  }
}

</mosaic_0001>

<llo_original>
// kernel: tpu_custom_call.1
$region0: #{tpu_custom_call.1}
  #allocation0 [shape = 'u32[]', space=smem, size = 0x4, offset = 0x4, fixed_abs, tag = 'smem constant byte address 0x4 - core index']
  #allocation1 [shape = 'u32[144,128]{1,0:T(1,128)}', space=vmem, size = 0x12000, scoped, tag = 'internal scratch']
  %s0 = inlined_call_operand.vmem [shape: f32[8,256], index: 0, kind: input, shape index: {}]
  %s1 = inlined_call_operand.hbm [shape: f32[256,128], index: 1, kind: input, shape index: {}]
  %s2 = inlined_call_operand.vmem [shape: f32[1,128], index: 2, kind: input, shape index: {}]
  %s3 = inlined_call_operand.vmem [shape: f32[128,128], index: 3, kind: input, shape index: {}]
  %s4 = inlined_call_operand.vmem [shape: f32[1,128], index: 4, kind: input, shape index: {}]
  %s5 = inlined_call_operand.vmem [shape: f32[128,32], index: 5, kind: input, shape index: {}]
  %s6 = inlined_call_operand.vmem [shape: f32[1,32], index: 6, kind: input, shape index: {}]
  %s7 = inlined_call_operand.hbm [shape: f32[8,32], index: 7, kind: output, shape index: {}]
  %s8 = sld [smem:[#allocation0]]
  $region42: #{tpu_custom_call.1} parent=0
    _
  %s10 = ssub.s32 1, %s8
  %s11 = scalar_select 0, %s10, %s8
  $region1: #{tpu_custom_call.1} parent=0
    #allocation2 [shape = 'u8[131072]{0}', space=vmem, size = 0x20000, scoped, tag = 'input window, operand 1, single buffered']
    #allocation3 [shape = 's32[1]{0}', space=sflag, size = 0x4, scoped, tag = 'scoped memory for tpu_custom_call.1']
    #allocation4 [shape = 's32[1]{0}', space=sflag, size = 0x4, scoped, tag = 'scoped memory for tpu_custom_call.1']
    #allocation5 [shape = 'u8[4096]{0}', space=vmem, size = 0x1000, scoped, tag = 'output window, operand 0, single buffered']
    %12 = vsyncpa [#allocation3], 0
    %13 = vsyncpa [#allocation4], 0
    // Predicated region
    $region2: #{tpu_custom_call.1} parent=1 // pred_check
      _
    $region3: #{tpu_custom_call.1} parent=1 // pred_check_branch
      %15 = sbr.rel (0) target = $region5
    $region4: #{tpu_custom_call.1} parent=1 // pred_region
      _
    $region5: #{tpu_custom_call.1} parent=1 // pred_fallthru
      _
    // Predicated region
    $region6: #{tpu_custom_call.1} parent=1 // pred_check
      _
    $region7: #{tpu_custom_call.1} parent=1 // pred_check_branch
      %17 = sbr.rel (0) target = $region9
    $region8: #{tpu_custom_call.1} parent=1 // pred_region
      %s19 = ssub.s32 4096, 4096
      %20 = vsyncadd [#allocation3], %s19
      %s21 = sshll.u32 [#allocation2], 4
      %s22 = int_to_ptr.vmem [resolvable:$true] %s21
      %27 = dma.hbm_to_vmem [thread:$0]  %s1, 4096, %s22, [#allocation3], 128, 128, 8
    $region9: #{tpu_custom_call.1} parent=1 // pred_fallthru
      _
    // Predicated region
    $region10: #{tpu_custom_call.1} parent=1 // pred_check
      _
    $region11: #{tpu_custom_call.1} parent=1 // pred_check_branch
      %29 = sbr.rel (0) target = $region13
    $region12: #{tpu_custom_call.1} parent=1 // pred_region
      _
    $region13: #{tpu_custom_call.1} parent=1 // pred_fallthru
      _
    // Predicated region
    $region14: #{tpu_custom_call.1} parent=1 // pred_check
      _
    $region15: #{tpu_custom_call.1} parent=1 // pred_check_branch
      %31 = sbr.rel (0) target = $region17
    $region16: #{tpu_custom_call.1} parent=1 // pred_region
      _
    $region17: #{tpu_custom_call.1} parent=1 // pred_fallthru
      _
    // Predicated region
    $region18: #{tpu_custom_call.1} parent=1 // pred_check
      _
    $region19: #{tpu_custom_call.1} parent=1 // pred_check_branch
      %33 = sbr.rel (0) target = $region21
    $region20: #{tpu_custom_call.1} parent=1 // pred_region
      _
    $region21: #{tpu_custom_call.1} parent=1 // pred_fallthru
      _
    // Predicated region
    $region22: #{tpu_custom_call.1} parent=1 // pred_check
      _
    $region23: #{tpu_custom_call.1} parent=1 // pred_check_branch
      %35 = sbr.rel (0) target = $region25
    $region24: #{tpu_custom_call.1} parent=1 // pred_region
      _
    $region25: #{tpu_custom_call.1} parent=1 // pred_fallthru
      _
    // Predicated region
    $region26: #{tpu_custom_call.1} parent=1 // pred_check
      _
    $region27: #{tpu_custom_call.1} parent=1 // pred_check_branch
      %37 = sbr.rel (0) target = $region29
    $region28: #{tpu_custom_call.1} parent=1 // pred_region
      _
    $region29: #{tpu_custom_call.1} parent=1 // pred_fallthru
      _
    // Predicated region
    $region30: #{tpu_custom_call.1} parent=1 // pred_check
      _
    $region31: #{tpu_custom_call.1} parent=1 // pred_check_branch
      %39 = sbr.rel (0) target = $region33
    $region32: #{tpu_custom_call.1} parent=1 // pred_region
      %40 = dma.done [#allocation3], 4096
    $region33: #{tpu_custom_call.1} parent=1 // pred_fallthru
      _
    %v41 = vld [vmem:[%s0] sm:$0xff]
    %v42 = vld [vmem:[%s0 + $0x8] sm:$0xff]
    %v43 = vld [vmem:[#allocation2] sm:$0xff]
    %v44 = vld [vmem:[#allocation2 + $0x8] sm:$0xff]
    %v45 = vld [vmem:[#allocation2 + $0x10] sm:$0xff]
    %v46 = vld [vmem:[#allocation2 + $0x18] sm:$0xff]
    %v47 = vld [vmem:[#allocation2 + $0x20] sm:$0xff]
    %v48 = vld [vmem:[#allocation2 + $0x28] sm:$0xff]
    %v49 = vld [vmem:[#allocation2 + $0x30] sm:$0xff]
    %v50 = vld [vmem:[#allocation2 + $0x38] sm:$0xff]
    %v51 = vld [vmem:[#allocation2 + $0x40] sm:$0xff]
    %v52 = vld [vmem:[#allocation2 + $0x48] sm:$0xff]
    %v53 = vld [vmem:[#allocation2 + $0x50] sm:$0xff]
    %v54 = vld [vmem:[#allocation2 + $0x58] sm:$0xff]
    %v55 = vld [vmem:[#allocation2 + $0x60] sm:$0xff]
    %v56 = vld [vmem:[#allocation2 + $0x68] sm:$0xff]
    %v57 = vld [vmem:[#allocation2 + $0x70] sm:$0xff]
    %v58 = vld [vmem:[#allocation2 + $0x78] sm:$0xff]
    %v59 = vld [vmem:[#allocation2 + $0x80] sm:$0xff]
    %v60 = vld [vmem:[#allocation2 + $0x88] sm:$0xff]
    %v61 = vld [vmem:[#allocation2 + $0x90] sm:$0xff]
    %v62 = vld [vmem:[#allocation2 + $0x98] sm:$0xff]
    %v63 = vld [vmem:[#allocation2 + $0xa0] sm:$0xff]
    %v64 = vld [vmem:[#allocation2 + $0xa8] sm:$0xff]
    %v65 = vld [vmem:[#allocation2 + $0xb0] sm:$0xff]
    %v66 = vld [vmem:[#allocation2 + $0xb8] sm:$0xff]
    %v67 = vld [vmem:[#allocation2 + $0xc0] sm:$0xff]
    %v68 = vld [vmem:[#allocation2 + $0xc8] sm:$0xff]
    %v69 = vld [vmem:[#allocation2 + $0xd0] sm:$0xff]
    %v70 = vld [vmem:[#allocation2 + $0xd8] sm:$0xff]
    %v71 = vld [vmem:[#allocation2 + $0xe0] sm:$0xff]
    %v72 = vld [vmem:[#allocation2 + $0xe8] sm:$0xff]
    %v73 = vld [vmem:[#allocation2 + $0xf0] sm:$0xff]
    %v74 = vld [vmem:[#allocation2 + $0xf8] sm:$0xff]
    %v75 = vld [vmem:[%s2] sm:$0x1]
    %v77 = vlaneseq
    %v78 = vshrl.u32 %v77, 7
    %v79 = vsub.s32 0, %v78
    %v80 = vrot.slane %v75, %v79
    %82 = vmatprep.subr.mxu0 0.0
    %83 = vmatpush1.msra.mxu0 %v43
    %84 = vmatprep.subr.mxu0 0.0
    %85 = vmatpush1.msra.mxu0 %v44
    %86 = vmatprep.subr.mxu0 0.0
    %87 = vmatpush1.msra.mxu0 %v45
    %88 = vmatprep.subr.mxu0 0.0
    %89 = vmatpush1.msra.mxu0 %v46
    %90 = vmatprep.subr.mxu0 0.0
    %91 = vmatpush1.msra.mxu0 %v47
    %92 = vmatprep.subr.mxu0 0.0
    %93 = vmatpush1.msra.mxu0 %v48
    %94 = vmatprep.subr.mxu0 0.0
    %95 = vmatpush1.msra.mxu0 %v49
    %96 = vmatprep.subr.mxu0 0.0
    %97 = vmatpush1.msra.mxu0 %v50
    %98 = vmatprep.subr.mxu0 0.0
    %99 = vmatpush1.msra.mxu0 %v51
    %100 = vmatprep.subr.mxu0 0.0
    %101 = vmatpush1.msra.mxu0 %v52
    %102 = vmatprep.subr.mxu0 0.0
    %103 = vmatpush1.msra.mxu0 %v53
    %104 = vmatprep.subr.mxu0 0.0
    %105 = vmatpush1.msra.mxu0 %v54
    %106 = vmatprep.subr.mxu0 0.0
    %107 = vmatpush1.msra.mxu0 %v55
    %108 = vmatprep.subr.mxu0 0.0
    %109 = vmatpush1.msra.mxu0 %v56
    %110 = vmatprep.subr.mxu0 0.0
    %111 = vmatpush1.msra.mxu0 %v57
    %112 = vmatprep.subr.mxu0 0.0
    %113 = vmatpush1.msra.mxu0 %v58
    %114 = vmatprep.subr.mxu0 0.0
    %115 = vmatpush1.msra.mxu0 %v59
    %116 = vmatprep.subr.mxu0 0.0
    %117 = vmatpush1.msra.mxu0 %v60
    %118 = vmatprep.subr.mxu0 0.0
    %119 = vmatpush1.msra.mxu0 %v61
    %120 = vmatprep.subr.mxu0 0.0
    %121 = vmatpush1.msra.mxu0 %v62
    %122 = vmatprep.subr.mxu0 0.0
    %123 = vmatpush1.msra.mxu0 %v63
    %124 = vmatprep.subr.mxu0 0.0
    %125 = vmatpush1.msra.mxu0 %v64
    %126 = vmatprep.subr.mxu0 0.0
    %127 = vmatpush1.msra.mxu0 %v65
    %128 = vmatprep.subr.mxu0 0.0
    %129 = vmatpush1.msra.mxu0 %v66
    %130 = vmatprep.subr.mxu0 0.0
    %131 = vmatpush1.msra.mxu0 %v67
    %132 = vmatprep.subr.mxu0 0.0
    %133 = vmatpush1.msra.mxu0 %v68
    %134 = vmatprep.subr.mxu0 0.0
    %135 = vmatpush1.msra.mxu0 %v69
    %136 = vmatprep.subr.mxu0 0.0
    %137 = vmatpush1.msra.mxu0 %v70
    %138 = vmatprep.subr.mxu0 0.0
    %139 = vmatpush1.msra.mxu0 %v71
    %140 = vmatprep.subr.mxu0 0.0
    %141 = vmatpush1.msra.mxu0 %v72
    %142 = vmatprep.subr.mxu0 0.0
    %143 = vmatpush1.msra.mxu0 %v73
    %144 = vmatprep.subr.mxu0 0.0
    %145 = vmatpush1.msra.mxu0 %v74
    %146 = vmatprep.mubr.f32.mxu0 %v42
    %147 = vmatmul.mubr.f32.gmra.mrb[0].mxu0 %v41
    %v148 = vpop.f32.mrb[0].mxu0
    %v149 = vadd.f32 %v80, %v148
    %v150 = vpop.f32.mrb[0].mxu0
    %151 = vdwg.mxu0
    %v152 = vmax.f32 %v149, 0.0
    %v153 = vld [vmem:[%s3] sm:$0xff]
    %v154 = vld [vmem:[%s3 + $0x8] sm:$0xff]
    %v155 = vld [vmem:[%s3 + $0x10] sm:$0xff]
    %v156 = vld [vmem:[%s3 + $0x18] sm:$0xff]
    %v157 = vld [vmem:[%s3 + $0x20] sm:$0xff]
    %v158 = vld [vmem:[%s3 + $0x28] sm:$0xff]
    %v159 = vld [vmem:[%s3 + $0x30] sm:$0xff]
    %v160 = vld [vmem:[%s3 + $0x38] sm:$0xff]
    %v161 = vld [vmem:[%s3 + $0x40] sm:$0xff]
    %v162 = vld [vmem:[%s3 + $0x48] sm:$0xff]
    %v163 = vld [vmem:[%s3 + $0x50] sm:$0xff]
    %v164 = vld [vmem:[%s3 + $0x58] sm:$0xff]
    %v165 = vld [vmem:[%s3 + $0x60] sm:$0xff]
    %v166 = vld [vmem:[%s3 + $0x68] sm:$0xff]
    %v167 = vld [vmem:[%s3 + $0x70] sm:$0xff]
    %v168 = vld [vmem:[%s3 + $0x78] sm:$0xff]
    %v169 = vld [vmem:[%s4] sm:$0x1]
    %v171 = vlaneseq
    %v172 = vshrl.u32 %v171, 7
    %v173 = vsub.s32 0, %v172
    %v174 = vrot.slane %v169, %v173
    %176 = vmatprep.subr.mxu0 0.0
    %177 = vmatpush1.msra.mxu0 %v153
    %178 = vmatprep.subr.mxu0 0.0
    %179 = vmatpush1.msra.mxu0 %v154
    %180 = vmatprep.subr.mxu0 0.0
    %181 = vmatpush1.msra.mxu0 %v155
    %182 = vmatprep.subr.mxu0 0.0
    %183 = vmatpush1.msra.mxu0 %v156
    %184 = vmatprep.subr.mxu0 0.0
    %185 = vmatpush1.msra.mxu0 %v157
    %186 = vmatprep.subr.mxu0 0.0
    %187 = vmatpush1.msra.mxu0 %v158
    %188 = vmatprep.subr.mxu0 0.0
    %189 = vmatpush1.msra.mxu0 %v159
    %190 = vmatprep.subr.mxu0 0.0
    %191 = vmatpush1.msra.mxu0 %v160
    %192 = vmatprep.subr.mxu0 0.0
    %193 = vmatpush1.msra.mxu0 %v161
    %194 = vmatprep.subr.mxu0 0.0
    %195 = vmatpush1.msra.mxu0 %v162
    %196 = vmatprep.subr.mxu0 0.0
    %197 = vmatpush1.msra.mxu0 %v163
    %198 = vmatprep.subr.mxu0 0.0
    %199 = vmatpush1.msra.mxu0 %v164
    %200 = vmatprep.subr.mxu0 0.0
    %201 = vmatpush1.msra.mxu0 %v165
    %202 = vmatprep.subr.mxu0 0.0
    %203 = vmatpush1.msra.mxu0 %v166
    %204 = vmatprep.subr.mxu0 0.0
    %205 = vmatpush1.msra.mxu0 %v167
    %206 = vmatprep.subr.mxu0 0.0
    %207 = vmatpush1.msra.mxu0 %v168
    %208 = vmatprep.subr.mxu0 0.0
    %209 = vmatpush1.msra.mxu0 0.0
    %210 = vmatprep.subr.mxu0 0.0
    %211 = vmatpush1.msra.mxu0 0.0
    %212 = vmatprep.subr.mxu0 0.0
    %213 = vmatpush1.msra.mxu0 0.0
    %214 = vmatprep.subr.mxu0 0.0
    %215 = vmatpush1.msra.mxu0 0.0
    %216 = vmatprep.subr.mxu0 0.0
    %217 = vmatpush1.msra.mxu0 0.0
    %218 = vmatprep.subr.mxu0 0.0
    %219 = vmatpush1.msra.mxu0 0.0
    %220 = vmatprep.subr.mxu0 0.0
    %221 = vmatpush1.msra.mxu0 0.0
    %222 = vmatprep.subr.mxu0 0.0
    %223 = vmatpush1.msra.mxu0 0.0
    %224 = vmatprep.subr.mxu0 0.0
    %225 = vmatpush1.msra.mxu0 0.0
    %226 = vmatprep.subr.mxu0 0.0
    %227 = vmatpush1.msra.mxu0 0.0
    %228 = vmatprep.subr.mxu0 0.0
    %229 = vmatpush1.msra.mxu0 0.0
    %230 = vmatprep.subr.mxu0 0.0
    %231 = vmatpush1.msra.mxu0 0.0
    %232 = vmatprep.subr.mxu0 0.0
    %233 = vmatpush1.msra.mxu0 0.0
    %234 = vmatprep.subr.mxu0 0.0
    %235 = vmatpush1.msra.mxu0 0.0
    %236 = vmatprep.subr.mxu0 0.0
    %237 = vmatpush1.msra.mxu0 0.0
    %238 = vmatprep.subr.mxu0 0.0
    %239 = vmatpush1.msra.mxu0 0.0
    %240 = vmatprep.mubr.f32.mxu0 0.0
    %241 = vmatmul.mubr.f32.gmra.mrb[0].mxu0 %v152
    %v242 = vpop.f32.mrb[0].mxu0
    %v243 = vadd.f32 %v174, %v242
    %v244 = vpop.f32.mrb[0].mxu0
    %245 = vdwg.mxu0
    %v246 = vmax.f32 %v243, 0.0
    %v247 = vld [vmem:[%s5] sm:$0xff]
    %v248 = vld [vmem:[%s5 + $0x8] sm:$0xff]
    %v249 = vld [vmem:[%s5 + $0x10] sm:$0xff]
    %v250 = vld [vmem:[%s5 + $0x18] sm:$0xff]
    %v251 = vld [vmem:[%s5 + $0x20] sm:$0xff]
    %v252 = vld [vmem:[%s5 + $0x28] sm:$0xff]
    %v253 = vld [vmem:[%s5 + $0x30] sm:$0xff]
    %v254 = vld [vmem:[%s5 + $0x38] sm:$0xff]
    %v255 = vld [vmem:[%s5 + $0x40] sm:$0xff]
    %v256 = vld [vmem:[%s5 + $0x48] sm:$0xff]
    %v257 = vld [vmem:[%s5 + $0x50] sm:$0xff]
    %v258 = vld [vmem:[%s5 + $0x58] sm:$0xff]
    %v259 = vld [vmem:[%s5 + $0x60] sm:$0xff]
    %v260 = vld [vmem:[%s5 + $0x68] sm:$0xff]
    %v261 = vld [vmem:[%s5 + $0x70] sm:$0xff]
    %v262 = vld [vmem:[%s5 + $0x78] sm:$0xff]
    %v263 = vld [vmem:[%s6] sm:$0x1]
    %v265 = vlaneseq
    %v266 = vshrl.u32 %v265, 7
    %v267 = vsub.s32 0, %v266
    %v268 = vrot.slane %v263, %v267
    %270 = vmatprep.subr.mxu0 0.0
    %271 = vmatpush1.msra.mxu0 %v247
    %272 = vmatprep.subr.mxu0 0.0
    %273 = vmatpush1.msra.mxu0 %v248
    %274 = vmatprep.subr.mxu0 0.0
    %275 = vmatpush1.msra.mxu0 %v249
    %276 = vmatprep.subr.mxu0 0.0
    %277 = vmatpush1.msra.mxu0 %v250
    %278 = vmatprep.subr.mxu0 0.0
    %279 = vmatpush1.msra.mxu0 %v251
    %280 = vmatprep.subr.mxu0 0.0
    %281 = vmatpush1.msra.mxu0 %v252
    %282 = vmatprep.subr.mxu0 0.0
    %283 = vmatpush1.msra.mxu0 %v253
    %284 = vmatprep.subr.mxu0 0.0
    %285 = vmatpush1.msra.mxu0 %v254
    %286 = vmatprep.subr.mxu0 0.0
    %287 = vmatpush1.msra.mxu0 %v255
    %288 = vmatprep.subr.mxu0 0.0
    %289 = vmatpush1.msra.mxu0 %v256
    %290 = vmatprep.subr.mxu0 0.0
    %291 = vmatpush1.msra.mxu0 %v257
    %292 = vmatprep.subr.mxu0 0.0
    %293 = vmatpush1.msra.mxu0 %v258
    %294 = vmatprep.subr.mxu0 0.0
    %295 = vmatpush1.msra.mxu0 %v259
    %296 = vmatprep.subr.mxu0 0.0
    %297 = vmatpush1.msra.mxu0 %v260
    %298 = vmatprep.subr.mxu0 0.0
    %299 = vmatpush1.msra.mxu0 %v261
    %300 = vmatprep.subr.mxu0 0.0
    %301 = vmatpush1.msra.mxu0 %v262
    %302 = vmatprep.subr.mxu0 0.0
    %303 = vmatpush1.msra.mxu0 0.0
    %304 = vmatprep.subr.mxu0 0.0
    %305 = vmatpush1.msra.mxu0 0.0
    %306 = vmatprep.subr.mxu0 0.0
    %307 = vmatpush1.msra.mxu0 0.0
    %308 = vmatprep.subr.mxu0 0.0
    %309 = vmatpush1.msra.mxu0 0.0
    %310 = vmatprep.subr.mxu0 0.0
    %311 = vmatpush1.msra.mxu0 0.0
    %312 = vmatprep.subr.mxu0 0.0
    %313 = vmatpush1.msra.mxu0 0.0
    %314 = vmatprep.subr.mxu0 0.0
    %315 = vmatpush1.msra.mxu0 0.0
    %316 = vmatprep.subr.mxu0 0.0
    %317 = vmatpush1.msra.mxu0 0.0
    %318 = vmatprep.subr.mxu0 0.0
    %319 = vmatpush1.msra.mxu0 0.0
    %320 = vmatprep.subr.mxu0 0.0
    %321 = vmatpush1.msra.mxu0 0.0
    %322 = vmatprep.subr.mxu0 0.0
    %323 = vmatpush1.msra.mxu0 0.0
    %324 = vmatprep.subr.mxu0 0.0
    %325 = vmatpush1.msra.mxu0 0.0
    %326 = vmatprep.subr.mxu0 0.0
    %327 = vmatpush1.msra.mxu0 0.0
    %328 = vmatprep.subr.mxu0 0.0
    %329 = vmatpush1.msra.mxu0 0.0
    %330 = vmatprep.subr.mxu0 0.0
    %331 = vmatpush1.msra.mxu0 0.0
    %332 = vmatprep.subr.mxu0 0.0
    %333 = vmatpush1.msra.mxu0 0.0
    %334 = vmatprep.mubr.f32.mxu0 0.0
    %335 = vmatmul.mubr.f32.gmra.mrb[0].mxu0 %v246
    %v336 = vpop.f32.mrb[0].mxu0
    %v337 = vadd.f32 %v268, %v336
    %v338 = vpop.f32.mrb[0].mxu0
    %339 = vdwg.mxu0
    %v340 = vmax.f32 %v337, 0.0
    %vm341 = vcmask 261120
    %342 = vst.msk [vmem:[#allocation5] sm:$0xff] %vm341, %v340
    // Predicated region
    $region34: #{tpu_custom_call.1} parent=1 // pred_check
      _
    $region35: #{tpu_custom_call.1} parent=1 // pred_check_branch
      %344 = sbr.rel (0) target = $region37
    $region36: #{tpu_custom_call.1} parent=1 // pred_region
      %s346 = ssub.s32 128, 128
      %347 = vsyncadd [#allocation4], %s346
      %s349 = sshll.u32 [#allocation5], 4
      %s350 = int_to_ptr.vmem [resolvable:$true] %s349
      %352 = dma.vmem_to_hbm [thread:$0]  %s350, 128, %s7, [#allocation4]
    $region37: #{tpu_custom_call.1} parent=1 // pred_fallthru
      _
    // Predicated region
    $region38: #{tpu_custom_call.1} parent=1 // pred_check
      _
    $region39: #{tpu_custom_call.1} parent=1 // pred_check_branch
      %354 = sbr.rel (0) target = $region41
    $region40: #{tpu_custom_call.1} parent=1 // pred_region
      %355 = dma.done [#allocation4], 128
    $region41: #{tpu_custom_call.1} parent=1 // pred_fallthru
      _
    %356 = vsyncpa [#allocation3], 1
    %357 = vsyncpa [#allocation4], 1

</llo_original>
